<compile_context>
chip_gen: v7x
topology: tpu7x:2x2x1
jax: 0.10.0
libtpu: 0.0.40
codegen_flags: <defaults>
</compile_context>

<pallas_src>
import numpy as np
import jax
import jax.numpy as jnp
from jax.experimental import pallas as pl
from jax.experimental.pallas import tpu as pltpu


def make_time_embedding(max_time: int, dim: int) -> jnp.ndarray:
    """Build the sinusoidal table exactly like the torch __init__ (the exponent
    uses the raw channel index i, i.e. 2*i/dim, matching the reference module)."""
    time = np.arange(max_time, dtype=np.float64)[:, None]           # (max_time, 1)
    i = np.arange(dim, dtype=np.float64)[None, :]                   # (1, dim)
    arg = (time / (10000.0 ** (2.0 * i / dim))).astype(np.float32)  # (max_time, dim)
    emb = np.where((np.arange(dim) % 2 == 0)[None, :],
                   np.sin(arg), np.cos(arg)).astype(np.float32)
    return jnp.asarray(emb)


def _round_up(x: int, m: int) -> int:
    return ((x + m - 1) // m) * m


def _dma_gather_kernel(t_ref, emb_hbm, out_ref, buf, sem):
    """Gather one (tb, dim_p) block of table rows via per-row HBM->VMEM DMAs.

    t_ref   : (padded,) int32 SMEM (scalar prefetch) -- row indices, all blocks
    emb_hbm : (max_time, dim_p) f32 HBM (pl.ANY)     -- full table, never copied wholesale
    out_ref : (tb, dim_p) f32 VMEM                   -- this grid step's output block
    buf     : (tb, dim_p) f32 VMEM scratch           -- DMA landing buffer
    sem     : (1,) DMA semaphore                     -- shared counting semaphore
    """
    tb = out_ref.shape[0]
    base = pl.program_id(0) * tb

    # Issue all row DMAs up front so their latencies overlap.
    @pl.loop(0, tb)
    def _start(r):
        pltpu.make_async_copy(emb_hbm.at[t_ref[base + r]], buf.at[r],
                              sem.at[0]).start()

    # Wait for all of them.  Every copy has the same size and signals the same
    # counting semaphore, so tb same-shaped waits consume exactly the signals
    # produced above (order does not matter since we touch no data until all
    # waits are done).
    @pl.loop(0, tb)
    def _wait(r):
        pltpu.make_async_copy(emb_hbm.at[0], buf.at[0], sem.at[0]).wait()

    # Single lane-dense store of the whole gathered block.
    out_ref[...] = buf[...]


def time_encoding_gather(t: jnp.ndarray, emb_padded: jnp.ndarray,
                         *, block_batch: int = 512) -> jnp.ndarray:
    """Return emb_padded[t] (rows gathered with the Pallas DMA-gather kernel)."""
    batch = t.shape[0]
    max_time, dim_p = emb_padded.shape

    # Torch would raise on out-of-range t; we clamp (documented deviation).
    t_idx = jnp.clip(t.astype(jnp.int32), 0, max_time - 1)

    # Rows per grid step: multiple of 8 (sublane); single step for small batches.
    tb = min(_round_up(batch, 8), _round_up(block_batch, 8))
    padded = _round_up(batch, tb)
    if padded != batch:
        # Padded rows gather row 0 and are sliced off below.
        t_idx = jnp.pad(t_idx, (0, padded - batch))
    n_steps = padded // tb

    # VMEM: double-buffered output block + single landing buffer (+ headroom).
    out_block_bytes = tb * dim_p * 4
    vmem_need = 3 * out_block_bytes + (2 << 20)
    # Raise the scoped limit only when we exceed the smallest per-generation
    # default (16 MiB on v5e; v6e/v7x default to 32 MiB).
    vmem_limit = int(vmem_need) if vmem_need > (16 << 20) else None

    # Advisory cost: we touch only the gathered rows, not the whole table.
    cost = pl.CostEstimate(
        flops=0, transcendentals=0,
        bytes_accessed=int(2 * padded * dim_p * 4 + padded * 4),
    )

    grid_spec = pltpu.PrefetchScalarGridSpec(
        num_scalar_prefetch=1,                         # t_idx -> SMEM scalars
        grid=(n_steps,),
        in_specs=[pl.BlockSpec(memory_space=pl.ANY)],  # table stays in HBM
        out_specs=pl.BlockSpec((tb, dim_p), lambda i, t_ref: (i, 0)),
        scratch_shapes=[
            pltpu.VMEM((tb, dim_p), emb_padded.dtype),
            pltpu.SemaphoreType.DMA((1,)),
        ],
    )

    out = pl.pallas_call(
        _dma_gather_kernel,
        out_shape=jax.ShapeDtypeStruct((padded, dim_p), emb_padded.dtype),
        grid_spec=grid_spec,
        compiler_params=pltpu.CompilerParams(
            # Batch blocks are independent and there is no resident table to
            # duplicate across TensorCores, so megacore sharding is safe.
            dimension_semantics=("parallel",),
            vmem_limit_bytes=vmem_limit,
        ),
        cost_estimate=cost,
    )(t_idx, emb_padded)

    return out[:batch]


class TimeEncoding:
    """JAX/Pallas equivalent of the reference torch TimeEncoding module."""

    def __init__(self, max_time: int, dim: int = 32, block_batch: int = 512):
        self.max_time = max_time
        self.dim = dim
        self.block_batch = block_batch
        # Exact torch-equivalent buffer (what forward() must index).
        self.embedding = make_time_embedding(max_time, dim)
        # Lane-padded copy used by the kernel (last dim -> multiple of 128) so
        # stores and row DMAs are lane-dense; built once, like the torch buffer.
        dim_p = _round_up(dim, 128)
        if dim_p != dim:
            self._emb_padded = jnp.pad(self.embedding, ((0, 0), (0, dim_p - dim)))
        else:
            self._emb_padded = self.embedding

    def __call__(self, t: jnp.ndarray) -> jnp.ndarray:
        out_p = time_encoding_gather(t, self._emb_padded,
                                     block_batch=self.block_batch)
        return out_p[:, :self.dim]


if __name__ == "__main__":
    max_time = 100
    dim = 32

    key = jax.random.PRNGKey(0)
    k1, k2 = jax.random.split(key)

    # Case 1: small batch, single grid step.
    enc = TimeEncoding(max_time, dim)
    t1 = jax.random.randint(k1, (8,), 0, max_time, dtype=jnp.int32)
    out1 = jax.block_until_ready(enc(t1))
    ref1 = enc.embedding[t1]
    assert out1.shape == (8, dim), out1.shape
    assert out1.dtype == jnp.float32, out1.dtype
    # Pure row copies -> bit-exact against the gather reference.
    np.testing.assert_allclose(np.asarray(out1), np.asarray(ref1), rtol=0, atol=0)

    # Case 2: batch needing padding and multiple grid steps (block_batch=8).
    enc_small = TimeEncoding(max_time, dim, block_batch=8)
    t2 = jax.random.randint(k2, (20,), 0, max_time, dtype=jnp.int32)
    out2 = jax.block_until_ready(enc_small(t2))
    ref2 = enc_small.embedding[t2]
    assert out2.shape == (20, dim), out2.shape
    assert out2.dtype == jnp.float32, out2.dtype
    np.testing.assert_allclose(np.asarray(out2), np.asarray(ref2), rtol=0, atol=0)

    print("KERNEL_OK")
</pallas_src>

<mosaic_0001>
module attributes {stable_mosaic.version = 11 : i64} {
  func.func @_dma_gather_kernel(%arg0: i32, %arg1: memref<8xi32, #tpu.memory_space<smem>>, %arg2: memref<100x128xf32, #tpu.memory_space<any>>, %arg3: memref<8x128xf32, #tpu.memory_space<vmem>>, %arg4: memref<8x128xf32, #tpu.memory_space<vmem>>, %arg5: memref<1x!tpu.dma_semaphore, #tpu.memory_space<semaphore_mem>>) attributes {dimension_semantics = [#tpu.dimension_semantics<parallel>], iteration_bounds = array<i64: 1>, scalar_prefetch = 1 : i64, scratch_operands = 2 : i64, tpu.core_type = #tpu.core_type<tc>, window_params = [{}, {transform_indices = @transform_1, window_bounds = array<i64: 8, 128>}]} {
    %c8_i32 = arith.constant 8 : i32
    %0 = arith.muli %arg0, %c8_i32 : i32
    %c0_i32 = arith.constant 0 : i32
    %c8_i32_0 = arith.constant 8 : i32
    %1 = arith.addi %c0_i32, %c8_i32_0 : i32
    %c1_i32 = arith.constant 1 : i32
    scf.for %arg6 = %c0_i32 to %1 step %c1_i32  : i32 {
      %c1_i32_8 = arith.constant 1 : i32
      %5 = arith.muli %arg6, %c1_i32_8 : i32
      %c0_i32_9 = arith.constant 0 : i32
      %6 = arith.addi %c0_i32_9, %5 : i32
      %7 = arith.addi %0, %6 : i32
      %8 = arith.index_cast %7 : i32 to index
      %9 = memref.load %arg1[%8] : memref<8xi32, #tpu.memory_space<smem>>
      %c0_i32_10 = arith.constant 0 : i32
      %c0_i32_11 = arith.constant 0 : i32
      %10 = tpu.memref_slice %arg2[%9, %c0_i32_11] : memref<100x128xf32, #tpu.memory_space<any>> -> memref<1x128xf32, #tpu.memory_space<any>>
      %11 = tpu.memref_squeeze %10 : memref<1x128xf32, #tpu.memory_space<any>> -> memref<128xf32, #tpu.memory_space<any>>
      %c0_i32_12 = arith.constant 0 : i32
      %12 = tpu.memref_slice %arg4[%6, %c0_i32_12] : memref<8x128xf32, #tpu.memory_space<vmem>> -> memref<1x128xf32, #tpu.memory_space<vmem>>
      %13 = tpu.memref_squeeze %12 : memref<1x128xf32, #tpu.memory_space<vmem>> -> memref<128xf32, #tpu.memory_space<vmem>>
      %14 = tpu.memref_slice %arg5[%c0_i32_10] : memref<1x!tpu.dma_semaphore, #tpu.memory_space<semaphore_mem>> -> memref<1x!tpu.dma_semaphore, #tpu.memory_space<semaphore_mem>>
      %15 = tpu.memref_squeeze %14 : memref<1x!tpu.dma_semaphore, #tpu.memory_space<semaphore_mem>> -> memref<!tpu.dma_semaphore, #tpu.memory_space<semaphore_mem>>
      tpu.enqueue_dma source(%11 : memref<128xf32, #tpu.memory_space<any>>) target(%13 : memref<128xf32, #tpu.memory_space<vmem>>) target_semaphore(%15 : memref<!tpu.dma_semaphore, #tpu.memory_space<semaphore_mem>>)
    }
    %c8_i32_1 = arith.constant 8 : i32
    %c0_i32_2 = arith.constant 0 : i32
    %c8_i32_3 = arith.constant 8 : i32
    %2 = arith.addi %c0_i32_2, %c8_i32_3 : i32
    %c1_i32_4 = arith.constant 1 : i32
    scf.for %arg6 = %c0_i32_2 to %2 step %c1_i32_4  : i32 {
      %c0_i32_8 = arith.constant 0 : i32
      %c0_i32_9 = arith.constant 0 : i32
      %c0_i32_10 = arith.constant 0 : i32
      %c0_i32_11 = arith.constant 0 : i32
      %5 = tpu.memref_slice %arg2[%c0_i32_8, %c0_i32_11] : memref<100x128xf32, #tpu.memory_space<any>> -> memref<1x128xf32, #tpu.memory_space<any>>
      %6 = tpu.memref_squeeze %5 : memref<1x128xf32, #tpu.memory_space<any>> -> memref<128xf32, #tpu.memory_space<any>>
      %c0_i32_12 = arith.constant 0 : i32
      %7 = tpu.memref_slice %arg4[%c0_i32_9, %c0_i32_12] : memref<8x128xf32, #tpu.memory_space<vmem>> -> memref<1x128xf32, #tpu.memory_space<vmem>>
      %8 = tpu.memref_squeeze %7 : memref<1x128xf32, #tpu.memory_space<vmem>> -> memref<128xf32, #tpu.memory_space<vmem>>
      %9 = tpu.memref_slice %arg5[%c0_i32_10] : memref<1x!tpu.dma_semaphore, #tpu.memory_space<semaphore_mem>> -> memref<1x!tpu.dma_semaphore, #tpu.memory_space<semaphore_mem>>
      %10 = tpu.memref_squeeze %9 : memref<1x!tpu.dma_semaphore, #tpu.memory_space<semaphore_mem>> -> memref<!tpu.dma_semaphore, #tpu.memory_space<semaphore_mem>>
      tpu.wait_dma2 semaphore(%10 : memref<!tpu.dma_semaphore, #tpu.memory_space<semaphore_mem>>) src(%6 : memref<128xf32, #tpu.memory_space<any>>) dst(%8 : memref<128xf32, #tpu.memory_space<vmem>>)
    }
    %c0 = arith.constant 0 : index
    %c0_5 = arith.constant 0 : index
    %3 = vector.load %arg4[%c0, %c0_5] : memref<8x128xf32, #tpu.memory_space<vmem>>, vector<8x128xf32>
    %c0_6 = arith.constant 0 : index
    %c0_7 = arith.constant 0 : index
    %4 = vector.load %arg3[%c0_6, %c0_7] : memref<8x128xf32, #tpu.memory_space<vmem>>, vector<8x128xf32>
    tpu.vector_store %arg3[%c0_6, %c0_7], %3 {strides = array<i32>} : memref<8x128xf32, #tpu.memory_space<vmem>>, vector<8x128xf32>,
    return
  }
  func.func @transform_1(%arg0: i32, %arg1: memref<8xi32, #tpu.memory_space<smem>>) -> (i32, i32) {
    %c0_i32 = arith.constant 0 : i32
    %c0_i32_0 = arith.constant 0 : i32
    return %arg0, %c0_i32 : i32, i32
  }
}

</mosaic_0001>

<llo_original>
// kernel: tpu_custom_call.1
$region0: #{tpu_custom_call.1}
  #allocation0 [shape = 'u32[]', space=smem, size = 0x4, offset = 0x4, fixed_abs, tag = 'smem constant byte address 0x4 - core index']
  #allocation1 [shape = 'u32[144,128]{1,0:T(1,128)}', space=vmem, size = 0x12000, scoped, tag = 'internal scratch']
  #allocation2 [shape = 'f32[8,128]{1,0:T(8,128)}', space=vmem, size = 0x1000, scoped, tag = 'scratch operand']
  #allocation3 [shape = 's32[1]{0}', space=sflag, size = 0x4, scoped, tag = 'scratch operand']
  #allocation4 [shape = 's32[1]{0}', space=sflag, size = 0x4, scoped, tag = 'scoped memory for tpu_custom_call.1']
  #allocation5 [shape = 'u8[512]{0}', space=smem, size = 0x200, scoped, tag = 'prefetched SMEM operand 0']
  #allocation8 [shape = 's32[]', space=sflag, size = 0x4, offset = 0, fixed_abs, tag = 'sflag constant byte address 0x0 - dummy sync flag']
  #allocation9 [shape = 's32[]', space=sflag, size = 0x4, offset = 0, fixed_abs, tag = 'sflag constant byte address 0x0 - dummy sync flag']
  #allocation10 [shape = 'u32[]', space=smem, size = 0x4, offset = 0x44, fixed_abs, tag = 'smem constant byte address 0x44 - assertion arg 0']
  #allocation11 [shape = 'u32[]', space=smem, size = 0x4, offset = 0x48, fixed_abs, tag = 'smem constant byte address 0x48 - assertion arg 1']
  %s0 = inlined_call_operand.hbm [shape: s32[8], index: 0, kind: input, shape index: {}]
  %s1 = inlined_call_operand.hbm [shape: f32[100,128], index: 1, kind: input, shape index: {}]
  %s2 = inlined_call_operand.hbm [shape: f32[8,128], index: 2, kind: output, shape index: {}]
  %s3 = sld [smem:[#allocation0]]
  $region28: #{tpu_custom_call.1} parent=0
    _
  %s5 = ssub.s32 1, %s3
  %s6 = scalar_select 0, %s5, %s3
  %8 = dma.hbm_to_smem %s0, 16, [#allocation5], [#allocation4]
  %9 = dma.done [#allocation4], 16
  %10 = sfence
  $region1: #{tpu_custom_call.1} parent=0
    #allocation6 [shape = 'u8[4096]{0}', space=vmem, size = 0x1000, scoped, tag = 'output window, operand 0, single buffered']
    #allocation7 [shape = 's32[1]{0}', space=sflag, size = 0x4, scoped, tag = 'scoped memory for tpu_custom_call.1']
    %11 = vsyncpa [#allocation7], 0
    %s12 = smul.u32 0, 8
    loop: start=0, step=1, limit=8
    $region2: #{tpu_custom_call.1} parent=1 // loop_pre_header
      _
    $region3: #{tpu_custom_call.1} parent=1 // loop_header
      %s14 = sphi 0, %s18
      %p15 = scmp.ge.s32.totalorder %s14, 8
    $region4: #{tpu_custom_call.1} parent=1 // loop_header_branch
      %17 = sbr.rel (%p15) target = $region8
    $region5: #{tpu_custom_call.1} parent=1 // loop_body
      %s19 = sadd.s32 %s12, %s14
      %s20 = sld [smem:[#allocation5 + %s19]]
      %s21 = smul.addr %s20, 16
      %s22 = scalar_lea.hbm %s1, %s21
      %s23 = scalar_lea.vmem [#allocation2], %s14
      // Predicated region
      $region9: #{tpu_custom_call.1} parent=5 // pred_check
        _
      $region10: #{tpu_custom_call.1} parent=5 // pred_check_branch
        %25 = sbr.rel target = $region12
      $region11: #{tpu_custom_call.1} parent=5 // pred_region
        %26 = sst [smem:[#allocation10]] [#allocation9]
        %27 = sst [smem:[#allocation11]] [#allocation8]
      $region12: #{tpu_custom_call.1} parent=5 // pred_fallthru
        _
      %29 = shalt.err (0)
      %s31 = sshll.u32 %s23, 4
      %s32 = int_to_ptr.vmem [resolvable:$true] %s31
      %34 = dma.hbm_to_vmem [thread:$0]  %s22, 16, %s32, [#allocation3]
    $region6: #{tpu_custom_call.1} parent=1 // loop_footer
      %s18 = sadd.s32 1, %s14
    $region7: #{tpu_custom_call.1} parent=1 // loop_footer_branch
      %13 = sbr.rel target = $region3
    $region8: #{tpu_custom_call.1} parent=1 // loop_exit
      _
    loop: start=0, step=1, limit=8
    $region13: #{tpu_custom_call.1} parent=1 // loop_pre_header
      _
    $region14: #{tpu_custom_call.1} parent=1 // loop_header
      %s36 = sphi 0, %s40
      %p37 = scmp.ge.s32.totalorder %s36, 8
    $region15: #{tpu_custom_call.1} parent=1 // loop_header_branch
      %39 = sbr.rel (%p37) target = $region19
    $region16: #{tpu_custom_call.1} parent=1 // loop_body
      %42 = dma.done [#allocation3], 16
    $region17: #{tpu_custom_call.1} parent=1 // loop_footer
      %s40 = sadd.s32 1, %s36
    $region18: #{tpu_custom_call.1} parent=1 // loop_footer_branch
      %35 = sbr.rel target = $region14
    $region19: #{tpu_custom_call.1} parent=1 // loop_exit
      _
    %v43 = vld [vmem:[#allocation2] sm:$0xff]
    %44 = vst [vmem:[#allocation6] sm:$0xff] %v43
    // Predicated region
    $region20: #{tpu_custom_call.1} parent=1 // pred_check
      _
    $region21: #{tpu_custom_call.1} parent=1 // pred_check_branch
      %46 = sbr.rel (0) target = $region23
    $region22: #{tpu_custom_call.1} parent=1 // pred_region
      %s48 = ssub.s32 128, 128
      %49 = vsyncadd [#allocation7], %s48
      %s51 = sshll.u32 [#allocation6], 4
      %s52 = int_to_ptr.vmem [resolvable:$true] %s51
      %54 = dma.vmem_to_hbm [thread:$0]  %s52, 128, %s2, [#allocation7]
    $region23: #{tpu_custom_call.1} parent=1 // pred_fallthru
      _
    // Predicated region
    $region24: #{tpu_custom_call.1} parent=1 // pred_check
      _
    $region25: #{tpu_custom_call.1} parent=1 // pred_check_branch
      %56 = sbr.rel (0) target = $region27
    $region26: #{tpu_custom_call.1} parent=1 // pred_region
      %57 = dma.done [#allocation7], 128
    $region27: #{tpu_custom_call.1} parent=1 // pred_fallthru
      _
    %58 = vsyncpa [#allocation7], 1
  %59 = vsyncmov [#allocation3]
  %s60 = vpop.sfrf %59
  %p61 = scmp.eq.s32.totalorder %s60, 0
  %p62 = pneg %p61
  %64 = shalt.err (%p62)

</llo_original>
